<compile_context>
chip_gen: v7x
topology: tpu7x:2x2x1
jax: 0.10.0
libtpu: 0.0.40
codegen_flags: <defaults>
</compile_context>

<pallas_src>
import functools

import jax
import jax.numpy as jnp
from jax.experimental import pallas as pl
from jax.experimental.pallas import tpu as pltpu


def anpm_attention_kernel(x_ref, w0_ref, out_ref, *, att_num, att_times,
                          att_weight):
    """One grid step == one block of G graphs.
    x_ref: (G, N, D); w0_ref: (D, D); out_ref: (G, att_num*D)."""
    x = x_ref[...]                     # (G, N, D) f32
    w0 = w0_ref[...]                   # (D, D)
    _, n_nodes, _ = x.shape
    inv_n = jnp.float32(1.0 / n_nodes)

    out = None
    for _ in range(att_times):         # small static loop
        # temp = mean over nodes  (sublane-ish reduce -> XLU slot)
        temp = jnp.sum(x, axis=1) * inv_n                            # (G, D)
        if att_weight:
            # (G, D) @ (D, D) on the MXU, f32 accumulate.
            h_avg = jnp.tanh(
                jnp.dot(temp, w0, preferred_element_type=jnp.float32))
        else:
            h_avg = temp
        # 'dot' att style: sigmoid(x @ h_avg^T), batched as mul + lane reduce.
        att = jax.nn.sigmoid(
            jnp.sum(x * h_avg[:, None, :], axis=-1, keepdims=True))  # (G, N, 1)
        # x_new = x * att is needed anyway; out == att^T @ x == sum(x_new, nodes).
        x = x * att                                                  # (G, N, D)
        out = jnp.sum(x, axis=1)                                     # (G, D)

    # All att_num repetitions are identical (same W_0, x resets each repetition
    # in the original module) -> compute once, tile across the concat dim, and
    # do a single wide lane-dense store.
    out_ref[...] = jnp.concatenate([out] * att_num, axis=-1).astype(out_ref.dtype)


def anpm_pool_attention(x, w0, *, att_num, att_times, att_weight=True,
                        graphs_per_block=None):
    """Pallas wrapper: x (B, N, D) f32, w0 (D, D) f32 -> (B, att_num*D) f32."""
    B, N, D = x.shape

    # Choose the graph-block size: multiple of 8 (f32 sublane), capped so
    # double-buffered x blocks stay far below VMEM limits even on v7x (64 MiB).
    if graphs_per_block is None:
        graphs_per_block = 128
    G = min(graphs_per_block, pl.cdiv(B, 8) * 8)
    G = max(8, (G // 8) * 8)

    # Pad the graph batch to a multiple of G (padded all-zero graphs produce
    # finite garbage rows that are sliced off below).
    Bp = pl.cdiv(B, G) * G
    if Bp != B:
        x = jnp.pad(x, ((0, Bp - B), (0, 0), (0, 0)))

    kern = functools.partial(anpm_attention_kernel, att_num=att_num,
                             att_times=att_times, att_weight=att_weight)
    out = pl.pallas_call(
        kern,
        out_shape=jax.ShapeDtypeStruct((Bp, att_num * D), jnp.float32),
        grid=(Bp // G,),
        in_specs=[
            pl.BlockSpec((G, N, D), lambda b: (b, 0, 0)),   # this block's graphs
            pl.BlockSpec((D, D), lambda b: (0, 0)),          # shared W_0
        ],
        out_specs=pl.BlockSpec((G, att_num * D), lambda b: (b, 0)),
        compiler_params=pltpu.CompilerParams(
            dimension_semantics=("parallel",)),
    )(x, w0)
    return out[:B]


def anpm_attention_ref(x, w0, *, att_num, att_times, att_weight=True):
    """Pure-JAX reference mirroring Attention._call_one_mat (att_style='dot')."""
    B = x.shape[0]
    rows = []
    for b in range(B):
        outputs = []
        for _ in range(att_num):
            xb = x[b]
            output = None
            for _ in range(att_times):
                temp = jnp.mean(xb, axis=0, keepdims=True)
                h_avg = jnp.tanh(temp @ w0) if att_weight else temp
                att = jax.nn.sigmoid(xb @ h_avg.T)
                output = att.T @ xb
                xb = xb * att
            outputs.append(output)
        rows.append(jnp.concatenate(outputs, axis=1))
    return jnp.concatenate(rows, axis=0)


if __name__ == "__main__":
    # Small shapes consistent with the module: input_dim D = 128, att_num = 2,
    # att_times = 2; 16 graphs of 16 nodes, tiled 8 graphs per grid step so the
    # grid has >1 step (exercises pipelining / megacore sharding).
    B, N, D = 16, 16, 128
    att_num, att_times = 2, 2

    key = jax.random.PRNGKey(0)
    kx, kw = jax.random.split(key)

    x = jax.random.normal(kx, (B, N, D), dtype=jnp.float32)

    # glorot / xavier-normal init for W_0: std = sqrt(2 / (fan_in + fan_out))
    w0_std = (2.0 / (D + D)) ** 0.5
    w0 = jax.random.normal(kw, (D, D), dtype=jnp.float32) * w0_std

    # TODO(synk): NTN, MNE and proj_layers are built in ANPM_Pool.__init__ but
    # unused by forward(); PyG batch plumbing (split_into_batches,
    # encode_node_features, merge_data) has no Pallas equivalent and is omitted —
    # the kernel returns the pooled per-graph feature rows (new_x per graph).

    out = anpm_pool_attention(x, w0, att_num=att_num, att_times=att_times,
                              att_weight=True, graphs_per_block=8)
    jax.block_until_ready(out)

    ref = anpm_attention_ref(x, w0, att_num=att_num, att_times=att_times,
                             att_weight=True)
    assert out.shape == (B, att_num * D), out.shape
    assert jnp.allclose(out, ref, atol=1e-4, rtol=1e-4), \
        float(jnp.max(jnp.abs(out - ref)))

    # Also exercise the padded path (B not a multiple of the sublane count).
    B2 = 2
    x2 = x[:B2]
    out2 = anpm_pool_attention(x2, w0, att_num=att_num, att_times=att_times,
                               att_weight=True)
    jax.block_until_ready(out2)
    assert out2.shape == (B2, att_num * D), out2.shape
    assert jnp.allclose(out2, ref[:B2], atol=1e-4, rtol=1e-4), \
        float(jnp.max(jnp.abs(out2 - ref[:B2])))

    print("KERNEL_OK")
</pallas_src>

<mosaic_0001>
module attributes {stable_mosaic.version = 11 : i64} {
  func.func @anpm_attention_kernel(%arg0: i32, %arg1: memref<8x16x128xf32, #tpu.memory_space<vmem>>, %arg2: memref<128x128xf32, #tpu.memory_space<vmem>>, %arg3: memref<8x256xf32, #tpu.memory_space<vmem>>) attributes {dimension_semantics = [#tpu.dimension_semantics<parallel>], iteration_bounds = array<i64: 2>, scalar_prefetch = 0 : i64, scratch_operands = 0 : i64, tpu.core_type = #tpu.core_type<tc>, window_params = [{transform_indices = @transform_0, window_bounds = array<i64: 8, 16, 128>}, {pipeline_mode = #tpu.pipeline_mode<synchronous>, transform_indices = @transform_1, window_bounds = array<i64: 128, 128>}, {transform_indices = @transform_2, window_bounds = array<i64: 8, 256>}]} {
    %c0 = arith.constant 0 : index
    %c0_0 = arith.constant 0 : index
    %c0_1 = arith.constant 0 : index
    %0 = vector.load %arg1[%c0, %c0_0, %c0_1] : memref<8x16x128xf32, #tpu.memory_space<vmem>>, vector<8x16x128xf32>
    %c0_2 = arith.constant 0 : index
    %c0_3 = arith.constant 0 : index
    %1 = vector.load %arg2[%c0_2, %c0_3] : memref<128x128xf32, #tpu.memory_space<vmem>>, vector<128x128xf32>
    %cst = arith.constant dense<0.000000e+00> : vector<8x128xf32>
    %2 = vector.multi_reduction <add>, %0, %cst [1] : vector<8x16x128xf32> to vector<8x128xf32>
    %cst_4 = arith.constant 6.250000e-02 : f32
    %3 = vector.broadcast %cst_4 : f32 to vector<8x128xf32>
    %4 = arith.mulf %2, %3 : vector<8x128xf32>
    %cst_5 = arith.constant dense<0.000000e+00> : vector<8x128xf32>
    %5 = tpu.matmul %4, %1, %cst_5 {dimension_numbers = #tpu.dot_dimension_numbers<[1], [0], [0], [1], [0, 0, 1, 1], [], []>} : vector<8x128xf32>, vector<128x128xf32>, vector<8x128xf32> -> vector<8x128xf32>
    %6 = math.tanh %5 : vector<8x128xf32>
    %7 = vector.shape_cast %6 : vector<8x128xf32> to vector<8x1x128xf32>
    %8 = vector.broadcast %7 : vector<8x1x128xf32> to vector<8x16x128xf32>
    %9 = arith.mulf %0, %8 : vector<8x16x128xf32>
    %cst_6 = arith.constant dense<0.000000e+00> : vector<8x16xf32>
    %10 = vector.multi_reduction <add>, %9, %cst_6 [2] : vector<8x16x128xf32> to vector<8x16xf32>
    %11 = vector.shape_cast %10 : vector<8x16xf32> to vector<8x16x1xf32>
    %12 = arith.negf %11 : vector<8x16x1xf32>
    %13 = math.exp %12 : vector<8x16x1xf32>
    %cst_7 = arith.constant 1.000000e+00 : f32
    %14 = vector.broadcast %cst_7 : f32 to vector<8x16x1xf32>
    %15 = arith.addf %14, %13 : vector<8x16x1xf32>
    %16 = arith.divf %14, %15 : vector<8x16x1xf32>
    %17 = vector.broadcast %16 : vector<8x16x1xf32> to vector<8x16x128xf32>
    %18 = arith.mulf %0, %17 : vector<8x16x128xf32>
    %cst_8 = arith.constant dense<0.000000e+00> : vector<8x128xf32>
    %19 = vector.multi_reduction <add>, %18, %cst_8 [1] : vector<8x16x128xf32> to vector<8x128xf32>
    %cst_9 = arith.constant 6.250000e-02 : f32
    %20 = vector.broadcast %cst_9 : f32 to vector<8x128xf32>
    %21 = arith.mulf %19, %20 : vector<8x128xf32>
    %cst_10 = arith.constant dense<0.000000e+00> : vector<8x128xf32>
    %22 = tpu.matmul %21, %1, %cst_10 {dimension_numbers = #tpu.dot_dimension_numbers<[1], [0], [0], [1], [0, 0, 1, 1], [], []>} : vector<8x128xf32>, vector<128x128xf32>, vector<8x128xf32> -> vector<8x128xf32>
    %23 = math.tanh %22 : vector<8x128xf32>
    %24 = vector.shape_cast %23 : vector<8x128xf32> to vector<8x1x128xf32>
    %25 = vector.broadcast %24 : vector<8x1x128xf32> to vector<8x16x128xf32>
    %26 = arith.mulf %18, %25 : vector<8x16x128xf32>
    %cst_11 = arith.constant dense<0.000000e+00> : vector<8x16xf32>
    %27 = vector.multi_reduction <add>, %26, %cst_11 [2] : vector<8x16x128xf32> to vector<8x16xf32>
    %28 = vector.shape_cast %27 : vector<8x16xf32> to vector<8x16x1xf32>
    %29 = arith.negf %28 : vector<8x16x1xf32>
    %30 = math.exp %29 : vector<8x16x1xf32>
    %cst_12 = arith.constant 1.000000e+00 : f32
    %31 = vector.broadcast %cst_12 : f32 to vector<8x16x1xf32>
    %32 = arith.addf %31, %30 : vector<8x16x1xf32>
    %33 = arith.divf %31, %32 : vector<8x16x1xf32>
    %34 = vector.broadcast %33 : vector<8x16x1xf32> to vector<8x16x128xf32>
    %35 = arith.mulf %18, %34 : vector<8x16x128xf32>
    %cst_13 = arith.constant dense<0.000000e+00> : vector<8x128xf32>
    %36 = vector.multi_reduction <add>, %35, %cst_13 [1] : vector<8x16x128xf32> to vector<8x128xf32>
    %37 = tpu.concatenate %36, %36 in 1 : vector<8x128xf32>, vector<8x128xf32> -> vector<8x256xf32>
    %c0_14 = arith.constant 0 : index
    %c0_15 = arith.constant 0 : index
    %38 = vector.load %arg3[%c0_14, %c0_15] : memref<8x256xf32, #tpu.memory_space<vmem>>, vector<8x256xf32>
    tpu.vector_store %arg3[%c0_14, %c0_15], %37 {strides = array<i32>} : memref<8x256xf32, #tpu.memory_space<vmem>>, vector<8x256xf32>,
    return
  }
  func.func @transform_0(%arg0: i32) -> (i32, i32, i32) {
    %c0_i32 = arith.constant 0 : i32
    %c0_i32_0 = arith.constant 0 : i32
    %c0_i32_1 = arith.constant 0 : i32
    return %arg0, %c0_i32, %c0_i32_0 : i32, i32, i32
  }
  func.func @transform_1(%arg0: i32) -> (i32, i32) {
    %c0_i32 = arith.constant 0 : i32
    %c0_i32_0 = arith.constant 0 : i32
    %c0_i32_1 = arith.constant 0 : i32
    return %c0_i32, %c0_i32_0 : i32, i32
  }
  func.func @transform_2(%arg0: i32) -> (i32, i32) {
    %c0_i32 = arith.constant 0 : i32
    %c0_i32_0 = arith.constant 0 : i32
    return %arg0, %c0_i32 : i32, i32
  }
}

</mosaic_0001>

<llo_original>
// kernel: tpu_custom_call.1
$region0: #{tpu_custom_call.1}
  #allocation0 [shape = 'u32[]', space=smem, size = 0x4, offset = 0x4, fixed_abs, tag = 'smem constant byte address 0x4 - core index']
  #allocation1 [shape = 'u32[144,128]{1,0:T(1,128)}', space=vmem, size = 0x12000, scoped, tag = 'internal scratch']
  %s0 = inlined_call_operand.hbm [shape: f32[16,16,128], index: 0, kind: input, shape index: {}]
  %s1 = inlined_call_operand.hbm [shape: f32[128,128], index: 1, kind: input, shape index: {}]
  %s2 = inlined_call_operand.hbm [shape: f32[16,256], index: 2, kind: output, shape index: {}]
  %s3 = sld [smem:[#allocation0]]
  $region49: #{tpu_custom_call.1} parent=0
    _
  %s5 = ssub.s32 1, %s3
  %s6 = scalar_select 0, %s5, %s3
  $region1: #{tpu_custom_call.1} parent=0
    #allocation2 [shape = 'u8[131072]{0}', space=vmem, size = 0x20000, scoped, tag = 'input window, operand 0']
    #allocation3 [shape = 's32[2]{0}', space=sflag, size = 0x8, scoped, tag = 'scoped memory for tpu_custom_call.1']
    #allocation4 [shape = 's32[2]{0}', space=sflag, size = 0x8, scoped, tag = 'scoped memory for tpu_custom_call.1']
    #allocation5 [shape = 'u8[65536]{0}', space=vmem, size = 0x10000, scoped, tag = 'input window, operand 1, single buffered']
    #allocation6 [shape = 's32[1]{0}', space=sflag, size = 0x4, scoped, tag = 'scoped memory for tpu_custom_call.1']
    #allocation7 [shape = 'u8[16384]{0}', space=vmem, size = 0x4000, scoped, tag = 'output window, operand 0']
    %7 = vsyncpa [#allocation3], 0
    %s8 = scalar_lea.sflag [#allocation3], 1
    %9 = vsyncpa %s8, 0
    %10 = vsyncpa [#allocation6], 0
    %11 = vsyncpa [#allocation4], 0
    %s12 = scalar_lea.sflag [#allocation4], 1
    %13 = vsyncpa %s12, 0
    loop: start=0, step=1, limit=4
    $region2: #{tpu_custom_call.1} parent=1 // loop_pre_header
      _
    $region3: #{tpu_custom_call.1} parent=1 // loop_header
      %s15 = sphi 0, %s19
      %p16 = scmp.ge.s32.totalorder %s15, 4
      %s25 = sphi 0, %s27
      %s28 = sphi 0, %s25
      %s29 = sphi 0, %s28
      %s45 = sphi 0, %s29
      %s49 = sphi 0, %s49
      %s51 = sphi 0, %s49
      %s52 = sphi 0, %s51
      %s66 = sphi 0, %s52
      %s72 = sphi 0, %s74
      %s75 = sphi 0, %s72
      %s76 = sphi 0, %s75
      %s92 = sphi 0, %s76
    $region4: #{tpu_custom_call.1} parent=1 // loop_header_branch
      %18 = sbr.rel (%p16) target = $region8
    $region5: #{tpu_custom_call.1} parent=1 // loop_body
      %s20 = ssub.s32 %s15, 1
      %s21 = ssub.s32 %s15, 2
      %s22 = sadd.s32 %s15, 1
      %s23 = ssub.s32 %s15, %s22
      %p24 = scmp.eq.s32.totalorder %s23, 0
      %s26 = sadd.s32 %s25, 1
      %s27 = scalar_select %p24, %s25, %s26
      %p30 = pneg %p24
      %p31 = scmp.eq.s32.totalorder %s15, 1
      %p32 = por %p30, %p31
      %p33 = scmp.ne.s32.totalorder %s25, %s28
      %p34 = scmp.eq.s32.totalorder %s15, 0
      %p35 = por %p33, %p34
      %p36 = scmp.ne.s32.totalorder %s25, %s28
      %p37 = scmp.eq.s32.totalorder %s20, 1
      %p38 = por %p36, %p37
      %p39 = scmp.ne.s32.totalorder %s28, %s29
      %p40 = scmp.eq.s32.totalorder %s20, 0
      %p41 = por %p39, %p40
      %p42 = scmp.ne.s32.totalorder %s28, %s29
      %p43 = scmp.eq.s32.totalorder %s21, 1
      %p44 = por %p42, %p43
      %p46 = scmp.ne.s32.totalorder %s29, %s45
      %p47 = scmp.eq.s32.totalorder %s21, 0
      %p48 = por %p46, %p47
      %s50 = sadd.s32 %s49, 1
      %p53 = scmp.eq.s32.totalorder %s15, 1
      %p54 = scmp.ne.s32.totalorder %s49, %s51
      %p55 = scmp.eq.s32.totalorder %s15, 0
      %p56 = por %p54, %p55
      %p57 = scmp.ne.s32.totalorder %s49, %s51
      %p58 = scmp.eq.s32.totalorder %s20, 1
      %p59 = por %p57, %p58
      %p60 = scmp.ne.s32.totalorder %s51, %s52
      %p61 = scmp.eq.s32.totalorder %s20, 0
      %p62 = por %p60, %p61
      %p63 = scmp.ne.s32.totalorder %s51, %s52
      %p64 = scmp.eq.s32.totalorder %s21, 1
      %p65 = por %p63, %p64
      %p67 = scmp.ne.s32.totalorder %s52, %s66
      %p68 = scmp.eq.s32.totalorder %s21, 0
      %p69 = por %p67, %p68
      %s70 = ssub.s32 %s15, %s22
      %p71 = scmp.eq.s32.totalorder %s70, 0
      %s73 = sadd.s32 %s72, 1
      %s74 = scalar_select %p71, %s72, %s73
      %p77 = pneg %p71
      %p78 = scmp.eq.s32.totalorder %s15, 1
      %p79 = por %p77, %p78
      %p80 = scmp.ne.s32.totalorder %s72, %s75
      %p81 = scmp.eq.s32.totalorder %s15, 0
      %p82 = por %p80, %p81
      %p83 = scmp.ne.s32.totalorder %s72, %s75
      %p84 = scmp.eq.s32.totalorder %s20, 1
      %p85 = por %p83, %p84
      %p86 = scmp.ne.s32.totalorder %s75, %s76
      %p87 = scmp.eq.s32.totalorder %s20, 0
      %p88 = por %p86, %p87
      %p89 = scmp.ne.s32.totalorder %s75, %s76
      %p90 = scmp.eq.s32.totalorder %s21, 1
      %p91 = por %p89, %p90
      %p93 = scmp.ne.s32.totalorder %s76, %s92
      %p94 = scmp.eq.s32.totalorder %s21, 0
      %p95 = por %p93, %p94
      %p96 = scmp.le.s32.totalorder 1, %s15
      %p97 = scmp.lt.s32.totalorder %s15, 3
      %p98 = pnand %p96, %p97
      %p99 = pneg %p98
      // Predicated region
      $region9: #{tpu_custom_call.1} parent=5 // pred_check
        _
      $region10: #{tpu_custom_call.1} parent=5 // pred_check_branch
        %101 = sbr.rel (%p98) target = $region12
      $region11: #{tpu_custom_call.1} parent=5 // pred_region
        %s102 = ssub.s32 %s15, 1
        // Predicated region
        $region13: #{tpu_custom_call.1} parent=11 // pred_check
          %p103 = pneg %p62
        $region14: #{tpu_custom_call.1} parent=11 // pred_check_branch
          %105 = sbr.rel (%p103) target = $region16
        $region15: #{tpu_custom_call.1} parent=11 // pred_region
          %s107 = ssub.s32 2048, 2048
          %108 = vsyncadd [#allocation6], %s107
          %s109 = sshll.u32 [#allocation5], 4
          %s110 = int_to_ptr.vmem [resolvable:$true] %s109
          %115 = dma.hbm_to_vmem [thread:$0]  %s1, 2048, %s110, [#allocation6], 128, 128, 8
        $region16: #{tpu_custom_call.1} parent=11 // pred_fallthru
          _
      $region12: #{tpu_custom_call.1} parent=5 // pred_fallthru
        _
      %p116 = scmp.lt.s32.totalorder %s15, 2
      // Predicated region
      $region17: #{tpu_custom_call.1} parent=5 // pred_check
        %p117 = pneg %p116
      $region18: #{tpu_custom_call.1} parent=5 // pred_check_branch
        %119 = sbr.rel (%p117) target = $region20
      $region19: #{tpu_custom_call.1} parent=5 // pred_region
        // Predicated region
        $region21: #{tpu_custom_call.1} parent=19 // pred_check
          %p120 = pneg %p35
        $region22: #{tpu_custom_call.1} parent=19 // pred_check_branch
          %122 = sbr.rel (%p120) target = $region24
        $region23: #{tpu_custom_call.1} parent=19 // pred_region
          %s123 = sand.u32 %s25, 1
          %s124 = scalar_lea.sflag [#allocation3], %s123
          %s125 = sand.u32 %s25, 1
          %s126 = smul.addr %s125, 128
          %s127 = scalar_lea.vmem [#allocation2], %s126
          %s128 = smul.u32 8, %s15
          %s130 = ssub.s32 2048, 2048
          %131 = vsyncadd %s124, %s130
          %s132 = smul.addr %s128, 2
          %s133 = smul.addr %s132, 128
          %s134 = scalar_lea.hbm %s0, %s133
          %s135 = sshll.u32 %s127, 4
          %s136 = int_to_ptr.vmem [resolvable:$true] %s135
          %141 = dma.hbm_to_vmem [thread:$0]  %s134, 2048, %s136, %s124, 128, 128, 8
        $region24: #{tpu_custom_call.1} parent=19 // pred_fallthru
          _
      $region20: #{tpu_custom_call.1} parent=5 // pred_fallthru
        _
      %p142 = scmp.le.s32.totalorder 1, %s15
      %p143 = scmp.lt.s32.totalorder %s15, 3
      %p144 = pnand %p142, %p143
      %p145 = pneg %p144
      // Predicated region
      $region25: #{tpu_custom_call.1} parent=5 // pred_check
        _
      $region26: #{tpu_custom_call.1} parent=5 // pred_check_branch
        %147 = sbr.rel (%p144) target = $region28
      $region27: #{tpu_custom_call.1} parent=5 // pred_region
        %s148 = ssub.s32 %s15, 1
        %s149 = sand.u32 %s28, 1
        %s150 = scalar_lea.sflag [#allocation3], %s149
        %s151 = sand.u32 %s28, 1
        %s152 = smul.addr %s151, 128
        %s153 = scalar_lea.vmem [#allocation2], %s152
        // Predicated region
        $region29: #{tpu_custom_call.1} parent=27 // pred_check
          %p154 = pneg %p41
        $region30: #{tpu_custom_call.1} parent=27 // pred_check_branch
          %156 = sbr.rel (%p154) target = $region32
        $region31: #{tpu_custom_call.1} parent=27 // pred_region
          %157 = dma.done %s150, 2048
        $region32: #{tpu_custom_call.1} parent=27 // pred_fallthru
          _
        // Predicated region
        $region33: #{tpu_custom_call.1} parent=27 // pred_check
          %p158 = pneg %p62
        $region34: #{tpu_custom_call.1} parent=27 // pred_check_branch
          %160 = sbr.rel (%p158) target = $region36
        $region35: #{tpu_custom_call.1} parent=27 // pred_region
          %161 = dma.done [#allocation6], 2048
        $region36: #{tpu_custom_call.1} parent=27 // pred_fallthru
          _
        %s162 = sand.u32 %s28, 1
        %s163 = scalar_lea.sflag [#allocation3], %s162
        %s164 = sand.u32 %s28, 1
        %s165 = smul.addr %s164, 128
        %s166 = scalar_lea.vmem [#allocation2], %s165
        %p167 = pneg %p41
        %p168 = pneg %p38
        %p169 = pneg %p62
        %p170 = pneg %p59
        %p171 = pneg %p88
        %p172 = pneg %p85
        %s173 = sand.u32 %s75, 1
        %s174 = scalar_lea.sflag [#allocation4], %s173
        %s175 = sand.u32 %s75, 1
        %s176 = smul.addr %s175, 16
        %s177 = scalar_lea.vmem [#allocation7], %s176
        %s178 = smul.u32 8, %s20
        %v179 = vld [vmem:[%s153] sm:$0xff]
        %v180 = vld [vmem:[%s153 + $0x8] sm:$0xff]
        %v181 = vld [vmem:[%s153 + $0x10] sm:$0xff]
        %v182 = vld [vmem:[%s153 + $0x18] sm:$0xff]
        %v183 = vld [vmem:[%s153 + $0x20] sm:$0xff]
        %v184 = vld [vmem:[%s153 + $0x28] sm:$0xff]
        %v185 = vld [vmem:[%s153 + $0x30] sm:$0xff]
        %v186 = vld [vmem:[%s153 + $0x38] sm:$0xff]
        %v187 = vld [vmem:[%s153 + $0x40] sm:$0xff]
        %v188 = vld [vmem:[%s153 + $0x48] sm:$0xff]
        %v189 = vld [vmem:[%s153 + $0x50] sm:$0xff]
        %v190 = vld [vmem:[%s153 + $0x58] sm:$0xff]
        %v191 = vld [vmem:[%s153 + $0x60] sm:$0xff]
        %v192 = vld [vmem:[%s153 + $0x68] sm:$0xff]
        %v193 = vld [vmem:[%s153 + $0x70] sm:$0xff]
        %v194 = vld [vmem:[%s153 + $0x78] sm:$0xff]
        %v195 = vld [vmem:[#allocation5] sm:$0xff]
        %v196 = vld [vmem:[#allocation5 + $0x8] sm:$0xff]
        %v197 = vld [vmem:[#allocation5 + $0x10] sm:$0xff]
        %v198 = vld [vmem:[#allocation5 + $0x18] sm:$0xff]
        %v199 = vld [vmem:[#allocation5 + $0x20] sm:$0xff]
        %v200 = vld [vmem:[#allocation5 + $0x28] sm:$0xff]
        %v201 = vld [vmem:[#allocation5 + $0x30] sm:$0xff]
        %v202 = vld [vmem:[#allocation5 + $0x38] sm:$0xff]
        %v203 = vld [vmem:[#allocation5 + $0x40] sm:$0xff]
        %v204 = vld [vmem:[#allocation5 + $0x48] sm:$0xff]
        %v205 = vld [vmem:[#allocation5 + $0x50] sm:$0xff]
        %v206 = vld [vmem:[#allocation5 + $0x58] sm:$0xff]
        %v207 = vld [vmem:[#allocation5 + $0x60] sm:$0xff]
        %v208 = vld [vmem:[#allocation5 + $0x68] sm:$0xff]
        %v209 = vld [vmem:[#allocation5 + $0x70] sm:$0xff]
        %v210 = vld [vmem:[#allocation5 + $0x78] sm:$0xff]
        %v211 = vadd.f32 %v179, %v180
        %v212 = vrot.slane %v211, 4
        %v213 = vadd.f32 %v211, %v212
        %v214 = vrot.slane %v213, 2
        %v215 = vadd.f32 %v213, %v214
        %v216 = vrot.slane %v215, 1
        %v217 = vadd.f32 %v215, %v216
        %v218 = vadd.f32 %v181, %v182
        %v219 = vrot.slane %v218, 4
        %v220 = vadd.f32 %v218, %v219
        %v221 = vrot.slane %v220, 2
        %v222 = vadd.f32 %v220, %v221
        %v223 = vrot.slane %v222, 1
        %v224 = vadd.f32 %v222, %v223
        %v225 = vadd.f32 %v183, %v184
        %v226 = vrot.slane %v225, 4
        %v227 = vadd.f32 %v225, %v226
        %v228 = vrot.slane %v227, 2
        %v229 = vadd.f32 %v227, %v228
        %v230 = vrot.slane %v229, 1
        %v231 = vadd.f32 %v229, %v230
        %v232 = vadd.f32 %v185, %v186
        %v233 = vrot.slane %v232, 4
        %v234 = vadd.f32 %v232, %v233
        %v235 = vrot.slane %v234, 2
        %v236 = vadd.f32 %v234, %v235
        %v237 = vrot.slane %v236, 1
        %v238 = vadd.f32 %v236, %v237
        %v239 = vadd.f32 %v187, %v188
        %v240 = vrot.slane %v239, 4
        %v241 = vadd.f32 %v239, %v240
        %v242 = vrot.slane %v241, 2
        %v243 = vadd.f32 %v241, %v242
        %v244 = vrot.slane %v243, 1
        %v245 = vadd.f32 %v243, %v244
        %v246 = vadd.f32 %v189, %v190
        %v247 = vrot.slane %v246, 4
        %v248 = vadd.f32 %v246, %v247
        %v249 = vrot.slane %v248, 2
        %v250 = vadd.f32 %v248, %v249
        %v251 = vrot.slane %v250, 1
        %v252 = vadd.f32 %v250, %v251
        %v253 = vadd.f32 %v191, %v192
        %v254 = vrot.slane %v253, 4
        %v255 = vadd.f32 %v253, %v254
        %v256 = vrot.slane %v255, 2
        %v257 = vadd.f32 %v255, %v256
        %v258 = vrot.slane %v257, 1
        %v259 = vadd.f32 %v257, %v258
        %v260 = vadd.f32 %v193, %v194
        %v261 = vrot.slane %v260, 4
        %v262 = vadd.f32 %v260, %v261
        %v263 = vrot.slane %v262, 2
        %v264 = vadd.f32 %v262, %v263
        %v265 = vrot.slane %v264, 1
        %v266 = vadd.f32 %v264, %v265
        %v267 = vmul.f32 %v217, 0.0625
        %v268 = vmul.f32 %v224, 0.0625
        %v269 = vmul.f32 %v231, 0.0625
        %v270 = vmul.f32 %v238, 0.0625
        %v271 = vmul.f32 %v245, 0.0625
        %v272 = vmul.f32 %v252, 0.0625
        %v273 = vmul.f32 %v259, 0.0625
        %v274 = vmul.f32 %v266, 0.0625
        %vm283 = vcmask 1041409
        %v284 = vsel %vm283, %v268, %v267
        %vm285 = vcmask 1042434
        %v286 = vsel %vm285, %v269, %v284
        %vm287 = vcmask 1043459
        %v288 = vsel %vm287, %v270, %v286
        %vm289 = vcmask 1044484
        %v290 = vsel %vm289, %v271, %v288
        %vm291 = vcmask 1045509
        %v292 = vsel %vm291, %v272, %v290
        %vm293 = vcmask 1046534
        %v294 = vsel %vm293, %v273, %v292
        %vm295 = vcmask 1047559
        %v296 = vsel %vm295, %v274, %v294
        %298 = vmatprep.subr.mxu0 0.0
        %299 = vmatpush1.msra.mxu0 %v195
        %300 = vmatprep.subr.mxu0 0.0
        %301 = vmatpush1.msra.mxu0 %v196
        %302 = vmatprep.subr.mxu0 0.0
        %303 = vmatpush1.msra.mxu0 %v197
        %304 = vmatprep.subr.mxu0 0.0
        %305 = vmatpush1.msra.mxu0 %v198
        %306 = vmatprep.subr.mxu0 0.0
        %307 = vmatpush1.msra.mxu0 %v199
        %308 = vmatprep.subr.mxu0 0.0
        %309 = vmatpush1.msra.mxu0 %v200
        %310 = vmatprep.subr.mxu0 0.0
        %311 = vmatpush1.msra.mxu0 %v201
        %312 = vmatprep.subr.mxu0 0.0
        %313 = vmatpush1.msra.mxu0 %v202
        %314 = vmatprep.subr.mxu0 0.0
        %315 = vmatpush1.msra.mxu0 %v203
        %316 = vmatprep.subr.mxu0 0.0
        %317 = vmatpush1.msra.mxu0 %v204
        %318 = vmatprep.subr.mxu0 0.0
        %319 = vmatpush1.msra.mxu0 %v205
        %320 = vmatprep.subr.mxu0 0.0
        %321 = vmatpush1.msra.mxu0 %v206
        %322 = vmatprep.subr.mxu0 0.0
        %323 = vmatpush1.msra.mxu0 %v207
        %324 = vmatprep.subr.mxu0 0.0
        %325 = vmatpush1.msra.mxu0 %v208
        %326 = vmatprep.subr.mxu0 0.0
        %327 = vmatpush1.msra.mxu0 %v209
        %328 = vmatprep.subr.mxu0 0.0
        %329 = vmatpush1.msra.mxu0 %v210
        %330 = vmatprep.subr.mxu0 0.0
        %331 = vmatpush1.msra.mxu0 0.0
        %332 = vmatprep.subr.mxu0 0.0
        %333 = vmatpush1.msra.mxu0 0.0
        %334 = vmatprep.subr.mxu0 0.0
        %335 = vmatpush1.msra.mxu0 0.0
        %336 = vmatprep.subr.mxu0 0.0
        %337 = vmatpush1.msra.mxu0 0.0
        %338 = vmatprep.subr.mxu0 0.0
        %339 = vmatpush1.msra.mxu0 0.0
        %340 = vmatprep.subr.mxu0 0.0
        %341 = vmatpush1.msra.mxu0 0.0
        %342 = vmatprep.subr.mxu0 0.0
        %343 = vmatpush1.msra.mxu0 0.0
        %344 = vmatprep.subr.mxu0 0.0
        %345 = vmatpush1.msra.mxu0 0.0
        %346 = vmatprep.subr.mxu0 0.0
        %347 = vmatpush1.msra.mxu0 0.0
        %348 = vmatprep.subr.mxu0 0.0
        %349 = vmatpush1.msra.mxu0 0.0
        %350 = vmatprep.subr.mxu0 0.0
        %351 = vmatpush1.msra.mxu0 0.0
        %352 = vmatprep.subr.mxu0 0.0
        %353 = vmatpush1.msra.mxu0 0.0
        %354 = vmatprep.subr.mxu0 0.0
        %355 = vmatpush1.msra.mxu0 0.0
        %356 = vmatprep.subr.mxu0 0.0
        %357 = vmatpush1.msra.mxu0 0.0
        %358 = vmatprep.subr.mxu0 0.0
        %359 = vmatpush1.msra.mxu0 0.0
        %360 = vmatprep.subr.mxu0 0.0
        %361 = vmatpush1.msra.mxu0 0.0
        %362 = vmatprep.mubr.f32.mxu0 0.0
        %363 = vmatmul.mubr.f32.gmra.mrb[0].mxu0 %v296
        %v364 = vpop.f32.mrb[0].mxu0
        %v365 = vadd.f32 0.0, %v364
        %v366 = vpop.f32.mrb[0].mxu0
        %367 = vdwg.mxu0
        %v368 = vtanh.pop %v365
        %v370 = vcombine.high %v368, %v368
        %v372 = vunpack.c.l.s4 1966171168
        %v373 = vunpack.c.0.s8 %v372
        %v374 = vlaneseq
        %v375 = vshrl.u32 %v374, 7
        %v376 = vsub.s32 %v373, %v375
        %v377 = vrot.slane %v368, %v376
        %v379 = vunpack.c.l.s4 1966171168
        %v380 = vunpack.c.0.s8 %v379
        %v381 = vlaneseq
        %v382 = vshrl.u32 %v381, 7
        %v383 = vsub.s32 %v380, %v382
        %v384 = vrot.slane %v370, %v383
        %v385 = vcombine.high %v377, %v377
        %v386 = vcombine.high %v384, %v384
        %v388 = vunpack.c.l.s4 1966171168
        %v389 = vunpack.c.0.s8 %v388
        %v390 = vlaneseq
        %v391 = vshrl.u32 %v390, 7
        %v392 = vsub.s32 %v389, %v391
        %v393 = vrot.slane %v377, %v392
        %v395 = vunpack.c.l.s4 1966171168
        %v396 = vunpack.c.0.s8 %v395
        %v397 = vlaneseq
        %v398 = vshrl.u32 %v397, 7
        %v399 = vsub.s32 %v396, %v398
        %v400 = vrot.slane %v384, %v399
        %v402 = vunpack.c.l.s4 1966171168
        %v403 = vunpack.c.0.s8 %v402
        %v404 = vlaneseq
        %v405 = vshrl.u32 %v404, 7
        %v406 = vsub.s32 %v403, %v405
        %v407 = vrot.slane %v385, %v406
        %v409 = vunpack.c.l.s4 1966171168
        %v410 = vunpack.c.0.s8 %v409
        %v411 = vlaneseq
        %v412 = vshrl.u32 %v411, 7
        %v413 = vsub.s32 %v410, %v412
        %v414 = vrot.slane %v386, %v413
        %v415 = vcombine.high %v393, %v393
        %v416 = vcombine.high %v400, %v400
        %v417 = vcombine.high %v407, %v407
        %v418 = vcombine.high %v414, %v414
        %v419 = vlaneseq
        %v420 = vshrl.u32 %v419, 7
        %v421 = vsub.s32 0, %v420
        %v422 = vrot.slane %v393, %v421
        %v423 = vlaneseq
        %v424 = vshrl.u32 %v423, 7
        %v425 = vsub.s32 0, %v424
        %v426 = vrot.slane %v407, %v425
        %v427 = vlaneseq
        %v428 = vshrl.u32 %v427, 7
        %v429 = vsub.s32 0, %v428
        %v430 = vrot.slane %v415, %v429
        %v431 = vlaneseq
        %v432 = vshrl.u32 %v431, 7
        %v433 = vsub.s32 0, %v432
        %v434 = vrot.slane %v417, %v433
        %v435 = vlaneseq
        %v436 = vshrl.u32 %v435, 7
        %v437 = vsub.s32 0, %v436
        %v438 = vrot.slane %v400, %v437
        %v439 = vlaneseq
        %v440 = vshrl.u32 %v439, 7
        %v441 = vsub.s32 0, %v440
        %v442 = vrot.slane %v414, %v441
        %v443 = vlaneseq
        %v444 = vshrl.u32 %v443, 7
        %v445 = vsub.s32 0, %v444
        %v446 = vrot.slane %v416, %v445
        %v447 = vlaneseq
        %v448 = vshrl.u32 %v447, 7
        %v449 = vsub.s32 0, %v448
        %v450 = vrot.slane %v418, %v449
        %v459 = vmul.f32 %v179, %v422
        %v460 = vmul.f32 %v180, %v422
        %v461 = vmul.f32 %v181, %v426
        %v462 = vmul.f32 %v182, %v426
        %v463 = vmul.f32 %v183, %v430
        %v464 = vmul.f32 %v184, %v430
        %v465 = vmul.f32 %v185, %v434
        %v466 = vmul.f32 %v186, %v434
        %v467 = vmul.f32 %v187, %v438
        %v468 = vmul.f32 %v188, %v438
        %v469 = vmul.f32 %v189, %v442
        %v470 = vmul.f32 %v190, %v442
        %v471 = vmul.f32 %v191, %v446
        %v472 = vmul.f32 %v192, %v446
        %v473 = vmul.f32 %v193, %v450
        %v474 = vmul.f32 %v194, %v450
        %475 = vadd.xlane.f32.xlu0 %v459
        %v476 = vpop.xlane.xlu0 %475
        %477 = vadd.xlane.f32.xlu0 %v460
        %v478 = vpop.xlane.xlu0 %477
        %479 = vadd.xlane.f32.xlu0 %v461
        %v480 = vpop.xlane.xlu0 %479
        %481 = vadd.xlane.f32.xlu0 %v462
        %v482 = vpop.xlane.xlu0 %481
        %483 = vadd.xlane.f32.xlu0 %v463
        %v484 = vpop.xlane.xlu0 %483
        %485 = vadd.xlane.f32.xlu0 %v464
        %v486 = vpop.xlane.xlu0 %485
        %487 = vadd.xlane.f32.xlu0 %v465
        %v488 = vpop.xlane.xlu0 %487
        %489 = vadd.xlane.f32.xlu0 %v466
        %v490 = vpop.xlane.xlu0 %489
        %491 = vadd.xlane.f32.xlu0 %v467
        %v492 = vpop.xlane.xlu0 %491
        %493 = vadd.xlane.f32.xlu0 %v468
        %v494 = vpop.xlane.xlu0 %493
        %495 = vadd.xlane.f32.xlu0 %v469
        %v496 = vpop.xlane.xlu0 %495
        %497 = vadd.xlane.f32.xlu0 %v470
        %v498 = vpop.xlane.xlu0 %497
        %499 = vadd.xlane.f32.xlu0 %v471
        %v500 = vpop.xlane.xlu0 %499
        %501 = vadd.xlane.f32.xlu0 %v472
        %v502 = vpop.xlane.xlu0 %501
        %503 = vadd.xlane.f32.xlu0 %v473
        %v504 = vpop.xlane.xlu0 %503
        %505 = vadd.xlane.f32.xlu0 %v474
        %v506 = vpop.xlane.xlu0 %505
        %v507 = vxor.u32 %v476, 2147483648
        %v508 = vxor.u32 %v478, 2147483648
        %v509 = vxor.u32 %v480, 2147483648
        %v510 = vxor.u32 %v482, 2147483648
        %v511 = vxor.u32 %v484, 2147483648
        %v512 = vxor.u32 %v486, 2147483648
        %v513 = vxor.u32 %v488, 2147483648
        %v514 = vxor.u32 %v490, 2147483648
        %v515 = vxor.u32 %v492, 2147483648
        %v516 = vxor.u32 %v494, 2147483648
        %v517 = vxor.u32 %v496, 2147483648
        %v518 = vxor.u32 %v498, 2147483648
        %v519 = vxor.u32 %v500, 2147483648
        %v520 = vxor.u32 %v502, 2147483648
        %v521 = vxor.u32 %v504, 2147483648
        %v522 = vxor.u32 %v506, 2147483648
        %v523 = vmul.f32 %v507, 1.442695
        %v524 = vpow.pop %v523
        %v525 = vmul.f32 %v508, 1.442695
        %v526 = vpow.pop %v525
        %v527 = vmul.f32 %v509, 1.442695
        %v528 = vpow.pop %v527
        %v529 = vmul.f32 %v510, 1.442695
        %v530 = vpow.pop %v529
        %v531 = vmul.f32 %v511, 1.442695
        %v532 = vpow.pop %v531
        %v533 = vmul.f32 %v512, 1.442695
        %v534 = vpow.pop %v533
        %v535 = vmul.f32 %v513, 1.442695
        %v536 = vpow.pop %v535
        %v537 = vmul.f32 %v514, 1.442695
        %v538 = vpow.pop %v537
        %v539 = vmul.f32 %v515, 1.442695
        %v540 = vpow.pop %v539
        %v541 = vmul.f32 %v516, 1.442695
        %v542 = vpow.pop %v541
        %v543 = vmul.f32 %v517, 1.442695
        %v544 = vpow.pop %v543
        %v545 = vmul.f32 %v518, 1.442695
        %v546 = vpow.pop %v545
        %v547 = vmul.f32 %v519, 1.442695
        %v548 = vpow.pop %v547
        %v549 = vmul.f32 %v520, 1.442695
        %v550 = vpow.pop %v549
        %v551 = vmul.f32 %v521, 1.442695
        %v552 = vpow.pop %v551
        %v553 = vmul.f32 %v522, 1.442695
        %v554 = vpow.pop %v553
        %v555 = vadd.f32 %v524, 1.0
        %v556 = vadd.f32 %v526, 1.0
        %v557 = vadd.f32 %v528, 1.0
        %v558 = vadd.f32 %v530, 1.0
        %v559 = vadd.f32 %v532, 1.0
        %v560 = vadd.f32 %v534, 1.0
        %v561 = vadd.f32 %v536, 1.0
        %v562 = vadd.f32 %v538, 1.0
        %v563 = vadd.f32 %v540, 1.0
        %v564 = vadd.f32 %v542, 1.0
        %v565 = vadd.f32 %v544, 1.0
        %v566 = vadd.f32 %v546, 1.0
        %v567 = vadd.f32 %v548, 1.0
        %v568 = vadd.f32 %v550, 1.0
        %v569 = vadd.f32 %v552, 1.0
        %v570 = vadd.f32 %v554, 1.0
        %v571 = vrcp.pop %v555
        %v572 = vmul.f32 1.0, %v571
        %v573 = vrcp.pop %v556
        %v574 = vmul.f32 1.0, %v573
        %v575 = vrcp.pop %v557
        %v576 = vmul.f32 1.0, %v575
        %v577 = vrcp.pop %v558
        %v578 = vmul.f32 1.0, %v577
        %v579 = vrcp.pop %v559
        %v580 = vmul.f32 1.0, %v579
        %v581 = vrcp.pop %v560
        %v582 = vmul.f32 1.0, %v581
        %v583 = vrcp.pop %v561
        %v584 = vmul.f32 1.0, %v583
        %v585 = vrcp.pop %v562
        %v586 = vmul.f32 1.0, %v585
        %v587 = vrcp.pop %v563
        %v588 = vmul.f32 1.0, %v587
        %v589 = vrcp.pop %v564
        %v590 = vmul.f32 1.0, %v589
        %v591 = vrcp.pop %v565
        %v592 = vmul.f32 1.0, %v591
        %v593 = vrcp.pop %v566
        %v594 = vmul.f32 1.0, %v593
        %v595 = vrcp.pop %v567
        %v596 = vmul.f32 1.0, %v595
        %v597 = vrcp.pop %v568
        %v598 = vmul.f32 1.0, %v597
        %v599 = vrcp.pop %v569
        %v600 = vmul.f32 1.0, %v599
        %v601 = vrcp.pop %v570
        %v602 = vmul.f32 1.0, %v601
        %v603 = vmul.f32 %v179, %v572
        %v604 = vmul.f32 %v180, %v574
        %v605 = vmul.f32 %v181, %v576
        %v606 = vmul.f32 %v182, %v578
        %v607 = vmul.f32 %v183, %v580
        %v608 = vmul.f32 %v184, %v582
        %v609 = vmul.f32 %v185, %v584
        %v610 = vmul.f32 %v186, %v586
        %v611 = vmul.f32 %v187, %v588
        %v612 = vmul.f32 %v188, %v590
        %v613 = vmul.f32 %v189, %v592
        %v614 = vmul.f32 %v190, %v594
        %v615 = vmul.f32 %v191, %v596
        %v616 = vmul.f32 %v192, %v598
        %v617 = vmul.f32 %v193, %v600
        %v618 = vmul.f32 %v194, %v602
        %v619 = vadd.f32 %v603, %v604
        %v620 = vrot.slane %v619, 4
        %v621 = vadd.f32 %v619, %v620
        %v622 = vrot.slane %v621, 2
        %v623 = vadd.f32 %v621, %v622
        %v624 = vrot.slane %v623, 1
        %v625 = vadd.f32 %v623, %v624
        %v626 = vadd.f32 %v605, %v606
        %v627 = vrot.slane %v626, 4
        %v628 = vadd.f32 %v626, %v627
        %v629 = vrot.slane %v628, 2
        %v630 = vadd.f32 %v628, %v629
        %v631 = vrot.slane %v630, 1
        %v632 = vadd.f32 %v630, %v631
        %v633 = vadd.f32 %v607, %v608
        %v634 = vrot.slane %v633, 4
        %v635 = vadd.f32 %v633, %v634
        %v636 = vrot.slane %v635, 2
        %v637 = vadd.f32 %v635, %v636
        %v638 = vrot.slane %v637, 1
        %v639 = vadd.f32 %v637, %v638
        %v640 = vadd.f32 %v609, %v610
        %v641 = vrot.slane %v640, 4
        %v642 = vadd.f32 %v640, %v641
        %v643 = vrot.slane %v642, 2
        %v644 = vadd.f32 %v642, %v643
        %v645 = vrot.slane %v644, 1
        %v646 = vadd.f32 %v644, %v645
        %v647 = vadd.f32 %v611, %v612
        %v648 = vrot.slane %v647, 4
        %v649 = vadd.f32 %v647, %v648
        %v650 = vrot.slane %v649, 2
        %v651 = vadd.f32 %v649, %v650
        %v652 = vrot.slane %v651, 1
        %v653 = vadd.f32 %v651, %v652
        %v654 = vadd.f32 %v613, %v614
        %v655 = vrot.slane %v654, 4
        %v656 = vadd.f32 %v654, %v655
        %v657 = vrot.slane %v656, 2
        %v658 = vadd.f32 %v656, %v657
        %v659 = vrot.slane %v658, 1
        %v660 = vadd.f32 %v658, %v659
        %v661 = vadd.f32 %v615, %v616
        %v662 = vrot.slane %v661, 4
        %v663 = vadd.f32 %v661, %v662
        %v664 = vrot.slane %v663, 2
        %v665 = vadd.f32 %v663, %v664
        %v666 = vrot.slane %v665, 1
        %v667 = vadd.f32 %v665, %v666
        %v668 = vadd.f32 %v617, %v618
        %v669 = vrot.slane %v668, 4
        %v670 = vadd.f32 %v668, %v669
        %v671 = vrot.slane %v670, 2
        %v672 = vadd.f32 %v670, %v671
        %v673 = vrot.slane %v672, 1
        %v674 = vadd.f32 %v672, %v673
        %v675 = vmul.f32 %v625, 0.0625
        %v676 = vmul.f32 %v632, 0.0625
        %v677 = vmul.f32 %v639, 0.0625
        %v678 = vmul.f32 %v646, 0.0625
        %v679 = vmul.f32 %v653, 0.0625
        %v680 = vmul.f32 %v660, 0.0625
        %v681 = vmul.f32 %v667, 0.0625
        %v682 = vmul.f32 %v674, 0.0625
        %v691 = vsel %vm283, %v676, %v675
        %v692 = vsel %vm285, %v677, %v691
        %v693 = vsel %vm287, %v678, %v692
        %v694 = vsel %vm289, %v679, %v693
        %v695 = vsel %vm291, %v680, %v694
        %v696 = vsel %vm293, %v681, %v695
        %v697 = vsel %vm295, %v682, %v696
        %699 = vmatprep.subr.mxu0 0.0
        %700 = vmatpush1.msra.mxu0 %v195
        %701 = vmatprep.subr.mxu0 0.0
        %702 = vmatpush1.msra.mxu0 %v196
        %703 = vmatprep.subr.mxu0 0.0
        %704 = vmatpush1.msra.mxu0 %v197
        %705 = vmatprep.subr.mxu0 0.0
        %706 = vmatpush1.msra.mxu0 %v198
        %707 = vmatprep.subr.mxu0 0.0
        %708 = vmatpush1.msra.mxu0 %v199
        %709 = vmatprep.subr.mxu0 0.0
        %710 = vmatpush1.msra.mxu0 %v200
        %711 = vmatprep.subr.mxu0 0.0
        %712 = vmatpush1.msra.mxu0 %v201
        %713 = vmatprep.subr.mxu0 0.0
        %714 = vmatpush1.msra.mxu0 %v202
        %715 = vmatprep.subr.mxu0 0.0
        %716 = vmatpush1.msra.mxu0 %v203
        %717 = vmatprep.subr.mxu0 0.0
        %718 = vmatpush1.msra.mxu0 %v204
        %719 = vmatprep.subr.mxu0 0.0
        %720 = vmatpush1.msra.mxu0 %v205
        %721 = vmatprep.subr.mxu0 0.0
        %722 = vmatpush1.msra.mxu0 %v206
        %723 = vmatprep.subr.mxu0 0.0
        %724 = vmatpush1.msra.mxu0 %v207
        %725 = vmatprep.subr.mxu0 0.0
        %726 = vmatpush1.msra.mxu0 %v208
        %727 = vmatprep.subr.mxu0 0.0
        %728 = vmatpush1.msra.mxu0 %v209
        %729 = vmatprep.subr.mxu0 0.0
        %730 = vmatpush1.msra.mxu0 %v210
        %731 = vmatprep.subr.mxu0 0.0
        %732 = vmatpush1.msra.mxu0 0.0
        %733 = vmatprep.subr.mxu0 0.0
        %734 = vmatpush1.msra.mxu0 0.0
        %735 = vmatprep.subr.mxu0 0.0
        %736 = vmatpush1.msra.mxu0 0.0
        %737 = vmatprep.subr.mxu0 0.0
        %738 = vmatpush1.msra.mxu0 0.0
        %739 = vmatprep.subr.mxu0 0.0
        %740 = vmatpush1.msra.mxu0 0.0
        %741 = vmatprep.subr.mxu0 0.0
        %742 = vmatpush1.msra.mxu0 0.0
        %743 = vmatprep.subr.mxu0 0.0
        %744 = vmatpush1.msra.mxu0 0.0
        %745 = vmatprep.subr.mxu0 0.0
        %746 = vmatpush1.msra.mxu0 0.0
        %747 = vmatprep.subr.mxu0 0.0
        %748 = vmatpush1.msra.mxu0 0.0
        %749 = vmatprep.subr.mxu0 0.0
        %750 = vmatpush1.msra.mxu0 0.0
        %751 = vmatprep.subr.mxu0 0.0
        %752 = vmatpush1.msra.mxu0 0.0
        %753 = vmatprep.subr.mxu0 0.0
        %754 = vmatpush1.msra.mxu0 0.0
        %755 = vmatprep.subr.mxu0 0.0
        %756 = vmatpush1.msra.mxu0 0.0
        %757 = vmatprep.subr.mxu0 0.0
        %758 = vmatpush1.msra.mxu0 0.0
        %759 = vmatprep.subr.mxu0 0.0
        %760 = vmatpush1.msra.mxu0 0.0
        %761 = vmatprep.subr.mxu0 0.0
        %762 = vmatpush1.msra.mxu0 0.0
        %763 = vmatprep.mubr.f32.mxu0 0.0
        %764 = vmatmul.mubr.f32.gmra.mrb[0].mxu0 %v697
        %v765 = vpop.f32.mrb[0].mxu0
        %v766 = vadd.f32 0.0, %v765
        %v767 = vpop.f32.mrb[0].mxu0
        %768 = vdwg.mxu0
        %v769 = vtanh.pop %v766
        %v771 = vcombine.high %v769, %v769
        %v773 = vunpack.c.l.s4 1966171168
        %v774 = vunpack.c.0.s8 %v773
        %v775 = vlaneseq
        %v776 = vshrl.u32 %v775, 7
        %v777 = vsub.s32 %v774, %v776
        %v778 = vrot.slane %v769, %v777
        %v780 = vunpack.c.l.s4 1966171168
        %v781 = vunpack.c.0.s8 %v780
        %v782 = vlaneseq
        %v783 = vshrl.u32 %v782, 7
        %v784 = vsub.s32 %v781, %v783
        %v785 = vrot.slane %v771, %v784
        %v786 = vcombine.high %v778, %v778
        %v787 = vcombine.high %v785, %v785
        %v789 = vunpack.c.l.s4 1966171168
        %v790 = vunpack.c.0.s8 %v789
        %v791 = vlaneseq
        %v792 = vshrl.u32 %v791, 7
        %v793 = vsub.s32 %v790, %v792
        %v794 = vrot.slane %v778, %v793
        %v796 = vunpack.c.l.s4 1966171168
        %v797 = vunpack.c.0.s8 %v796
        %v798 = vlaneseq
        %v799 = vshrl.u32 %v798, 7
        %v800 = vsub.s32 %v797, %v799
        %v801 = vrot.slane %v785, %v800
        %v803 = vunpack.c.l.s4 1966171168
        %v804 = vunpack.c.0.s8 %v803
        %v805 = vlaneseq
        %v806 = vshrl.u32 %v805, 7
        %v807 = vsub.s32 %v804, %v806
        %v808 = vrot.slane %v786, %v807
        %v810 = vunpack.c.l.s4 1966171168
        %v811 = vunpack.c.0.s8 %v810
        %v812 = vlaneseq
        %v813 = vshrl.u32 %v812, 7
        %v814 = vsub.s32 %v811, %v813
        %v815 = vrot.slane %v787, %v814
        %v816 = vcombine.high %v794, %v794
        %v817 = vcombine.high %v801, %v801
        %v818 = vcombine.high %v808, %v808
        %v819 = vcombine.high %v815, %v815
        %v820 = vlaneseq
        %v821 = vshrl.u32 %v820, 7
        %v822 = vsub.s32 0, %v821
        %v823 = vrot.slane %v794, %v822
        %v824 = vlaneseq
        %v825 = vshrl.u32 %v824, 7
        %v826 = vsub.s32 0, %v825
        %v827 = vrot.slane %v808, %v826
        %v828 = vlaneseq
        %v829 = vshrl.u32 %v828, 7
        %v830 = vsub.s32 0, %v829
        %v831 = vrot.slane %v816, %v830
        %v832 = vlaneseq
        %v833 = vshrl.u32 %v832, 7
        %v834 = vsub.s32 0, %v833
        %v835 = vrot.slane %v818, %v834
        %v836 = vlaneseq
        %v837 = vshrl.u32 %v836, 7
        %v838 = vsub.s32 0, %v837
        %v839 = vrot.slane %v801, %v838
        %v840 = vlaneseq
        %v841 = vshrl.u32 %v840, 7
        %v842 = vsub.s32 0, %v841
        %v843 = vrot.slane %v815, %v842
        %v844 = vlaneseq
        %v845 = vshrl.u32 %v844, 7
        %v846 = vsub.s32 0, %v845
        %v847 = vrot.slane %v817, %v846
        %v848 = vlaneseq
        %v849 = vshrl.u32 %v848, 7
        %v850 = vsub.s32 0, %v849
        %v851 = vrot.slane %v819, %v850
        %v860 = vmul.f32 %v603, %v823
        %v861 = vmul.f32 %v604, %v823
        %v862 = vmul.f32 %v605, %v827
        %v863 = vmul.f32 %v606, %v827
        %v864 = vmul.f32 %v607, %v831
        %v865 = vmul.f32 %v608, %v831
        %v866 = vmul.f32 %v609, %v835
        %v867 = vmul.f32 %v610, %v835
        %v868 = vmul.f32 %v611, %v839
        %v869 = vmul.f32 %v612, %v839
        %v870 = vmul.f32 %v613, %v843
        %v871 = vmul.f32 %v614, %v843
        %v872 = vmul.f32 %v615, %v847
        %v873 = vmul.f32 %v616, %v847
        %v874 = vmul.f32 %v617, %v851
        %v875 = vmul.f32 %v618, %v851
        %876 = vadd.xlane.f32.xlu0 %v860
        %v877 = vpop.xlane.xlu0 %876
        %878 = vadd.xlane.f32.xlu0 %v861
        %v879 = vpop.xlane.xlu0 %878
        %880 = vadd.xlane.f32.xlu0 %v862
        %v881 = vpop.xlane.xlu0 %880
        %882 = vadd.xlane.f32.xlu0 %v863
        %v883 = vpop.xlane.xlu0 %882
        %884 = vadd.xlane.f32.xlu0 %v864
        %v885 = vpop.xlane.xlu0 %884
        %886 = vadd.xlane.f32.xlu0 %v865
        %v887 = vpop.xlane.xlu0 %886
        %888 = vadd.xlane.f32.xlu0 %v866
        %v889 = vpop.xlane.xlu0 %888
        %890 = vadd.xlane.f32.xlu0 %v867
        %v891 = vpop.xlane.xlu0 %890
        %892 = vadd.xlane.f32.xlu0 %v868
        %v893 = vpop.xlane.xlu0 %892
        %894 = vadd.xlane.f32.xlu0 %v869
        %v895 = vpop.xlane.xlu0 %894
        %896 = vadd.xlane.f32.xlu0 %v870
        %v897 = vpop.xlane.xlu0 %896
        %898 = vadd.xlane.f32.xlu0 %v871
        %v899 = vpop.xlane.xlu0 %898
        %900 = vadd.xlane.f32.xlu0 %v872
        %v901 = vpop.xlane.xlu0 %900
        %902 = vadd.xlane.f32.xlu0 %v873
        %v903 = vpop.xlane.xlu0 %902
        %904 = vadd.xlane.f32.xlu0 %v874
        %v905 = vpop.xlane.xlu0 %904
        %906 = vadd.xlane.f32.xlu0 %v875
        %v907 = vpop.xlane.xlu0 %906
        %v908 = vxor.u32 %v877, 2147483648
        %v909 = vxor.u32 %v879, 2147483648
        %v910 = vxor.u32 %v881, 2147483648
        %v911 = vxor.u32 %v883, 2147483648
        %v912 = vxor.u32 %v885, 2147483648
        %v913 = vxor.u32 %v887, 2147483648
        %v914 = vxor.u32 %v889, 2147483648
        %v915 = vxor.u32 %v891, 2147483648
        %v916 = vxor.u32 %v893, 2147483648
        %v917 = vxor.u32 %v895, 2147483648
        %v918 = vxor.u32 %v897, 2147483648
        %v919 = vxor.u32 %v899, 2147483648
        %v920 = vxor.u32 %v901, 2147483648
        %v921 = vxor.u32 %v903, 2147483648
        %v922 = vxor.u32 %v905, 2147483648
        %v923 = vxor.u32 %v907, 2147483648
        %v924 = vmul.f32 %v908, 1.442695
        %v925 = vpow.pop %v924
        %v926 = vmul.f32 %v909, 1.442695
        %v927 = vpow.pop %v926
        %v928 = vmul.f32 %v910, 1.442695
        %v929 = vpow.pop %v928
        %v930 = vmul.f32 %v911, 1.442695
        %v931 = vpow.pop %v930
        %v932 = vmul.f32 %v912, 1.442695
        %v933 = vpow.pop %v932
        %v934 = vmul.f32 %v913, 1.442695
        %v935 = vpow.pop %v934
        %v936 = vmul.f32 %v914, 1.442695
        %v937 = vpow.pop %v936
        %v938 = vmul.f32 %v915, 1.442695
        %v939 = vpow.pop %v938
        %v940 = vmul.f32 %v916, 1.442695
        %v941 = vpow.pop %v940
        %v942 = vmul.f32 %v917, 1.442695
        %v943 = vpow.pop %v942
        %v944 = vmul.f32 %v918, 1.442695
        %v945 = vpow.pop %v944
        %v946 = vmul.f32 %v919, 1.442695
        %v947 = vpow.pop %v946
        %v948 = vmul.f32 %v920, 1.442695
        %v949 = vpow.pop %v948
        %v950 = vmul.f32 %v921, 1.442695
        %v951 = vpow.pop %v950
        %v952 = vmul.f32 %v922, 1.442695
        %v953 = vpow.pop %v952
        %v954 = vmul.f32 %v923, 1.442695
        %v955 = vpow.pop %v954
        %v956 = vadd.f32 %v925, 1.0
        %v957 = vadd.f32 %v927, 1.0
        %v958 = vadd.f32 %v929, 1.0
        %v959 = vadd.f32 %v931, 1.0
        %v960 = vadd.f32 %v933, 1.0
        %v961 = vadd.f32 %v935, 1.0
        %v962 = vadd.f32 %v937, 1.0
        %v963 = vadd.f32 %v939, 1.0
        %v964 = vadd.f32 %v941, 1.0
        %v965 = vadd.f32 %v943, 1.0
        %v966 = vadd.f32 %v945, 1.0
        %v967 = vadd.f32 %v947, 1.0
        %v968 = vadd.f32 %v949, 1.0
        %v969 = vadd.f32 %v951, 1.0
        %v970 = vadd.f32 %v953, 1.0
        %v971 = vadd.f32 %v955, 1.0
        %v972 = vrcp.pop %v956
        %v973 = vmul.f32 1.0, %v972
        %v974 = vrcp.pop %v957
        %v975 = vmul.f32 1.0, %v974
        %v976 = vrcp.pop %v958
        %v977 = vmul.f32 1.0, %v976
        %v978 = vrcp.pop %v959
        %v979 = vmul.f32 1.0, %v978
        %v980 = vrcp.pop %v960
        %v981 = vmul.f32 1.0, %v980
        %v982 = vrcp.pop %v961
        %v983 = vmul.f32 1.0, %v982
        %v984 = vrcp.pop %v962
        %v985 = vmul.f32 1.0, %v984
        %v986 = vrcp.pop %v963
        %v987 = vmul.f32 1.0, %v986
        %v988 = vrcp.pop %v964
        %v989 = vmul.f32 1.0, %v988
        %v990 = vrcp.pop %v965
        %v991 = vmul.f32 1.0, %v990
        %v992 = vrcp.pop %v966
        %v993 = vmul.f32 1.0, %v992
        %v994 = vrcp.pop %v967
        %v995 = vmul.f32 1.0, %v994
        %v996 = vrcp.pop %v968
        %v997 = vmul.f32 1.0, %v996
        %v998 = vrcp.pop %v969
        %v999 = vmul.f32 1.0, %v998
        %v1000 = vrcp.pop %v970
        %v1001 = vmul.f32 1.0, %v1000
        %v1002 = vrcp.pop %v971
        %v1003 = vmul.f32 1.0, %v1002
        %v1004 = vmul.f32 %v603, %v973
        %v1005 = vmul.f32 %v604, %v975
        %v1006 = vmul.f32 %v605, %v977
        %v1007 = vmul.f32 %v606, %v979
        %v1008 = vmul.f32 %v607, %v981
        %v1009 = vmul.f32 %v608, %v983
        %v1010 = vmul.f32 %v609, %v985
        %v1011 = vmul.f32 %v610, %v987
        %v1012 = vmul.f32 %v611, %v989
        %v1013 = vmul.f32 %v612, %v991
        %v1014 = vmul.f32 %v613, %v993
        %v1015 = vmul.f32 %v614, %v995
        %v1016 = vmul.f32 %v615, %v997
        %v1017 = vmul.f32 %v616, %v999
        %v1018 = vmul.f32 %v617, %v1001
        %v1019 = vmul.f32 %v618, %v1003
        %v1020 = vadd.f32 %v1004, %v1005
        %v1021 = vrot.slane %v1020, 4
        %v1022 = vadd.f32 %v1020, %v1021
        %v1023 = vrot.slane %v1022, 2
        %v1024 = vadd.f32 %v1022, %v1023
        %v1025 = vrot.slane %v1024, 1
        %v1026 = vadd.f32 %v1024, %v1025
        %v1027 = vadd.f32 %v1006, %v1007
        %v1028 = vrot.slane %v1027, 4
        %v1029 = vadd.f32 %v1027, %v1028
        %v1030 = vrot.slane %v1029, 2
        %v1031 = vadd.f32 %v1029, %v1030
        %v1032 = vrot.slane %v1031, 1
        %v1033 = vadd.f32 %v1031, %v1032
        %v1034 = vadd.f32 %v1008, %v1009
        %v1035 = vrot.slane %v1034, 4
        %v1036 = vadd.f32 %v1034, %v1035
        %v1037 = vrot.slane %v1036, 2
        %v1038 = vadd.f32 %v1036, %v1037
        %v1039 = vrot.slane %v1038, 1
        %v1040 = vadd.f32 %v1038, %v1039
        %v1041 = vadd.f32 %v1010, %v1011
        %v1042 = vrot.slane %v1041, 4
        %v1043 = vadd.f32 %v1041, %v1042
        %v1044 = vrot.slane %v1043, 2
        %v1045 = vadd.f32 %v1043, %v1044
        %v1046 = vrot.slane %v1045, 1
        %v1047 = vadd.f32 %v1045, %v1046
        %v1048 = vadd.f32 %v1012, %v1013
        %v1049 = vrot.slane %v1048, 4
        %v1050 = vadd.f32 %v1048, %v1049
        %v1051 = vrot.slane %v1050, 2
        %v1052 = vadd.f32 %v1050, %v1051
        %v1053 = vrot.slane %v1052, 1
        %v1054 = vadd.f32 %v1052, %v1053
        %v1055 = vadd.f32 %v1014, %v1015
        %v1056 = vrot.slane %v1055, 4
        %v1057 = vadd.f32 %v1055, %v1056
        %v1058 = vrot.slane %v1057, 2
        %v1059 = vadd.f32 %v1057, %v1058
        %v1060 = vrot.slane %v1059, 1
        %v1061 = vadd.f32 %v1059, %v1060
        %v1062 = vadd.f32 %v1016, %v1017
        %v1063 = vrot.slane %v1062, 4
        %v1064 = vadd.f32 %v1062, %v1063
        %v1065 = vrot.slane %v1064, 2
        %v1066 = vadd.f32 %v1064, %v1065
        %v1067 = vrot.slane %v1066, 1
        %v1068 = vadd.f32 %v1066, %v1067
        %v1069 = vadd.f32 %v1018, %v1019
        %v1070 = vrot.slane %v1069, 4
        %v1071 = vadd.f32 %v1069, %v1070
        %v1072 = vrot.slane %v1071, 2
        %v1073 = vadd.f32 %v1071, %v1072
        %v1074 = vrot.slane %v1073, 1
        %v1075 = vadd.f32 %v1073, %v1074
        %v1084 = vsel %vm283, %v1033, %v1026
        %v1085 = vsel %vm285, %v1040, %v1084
        %v1086 = vsel %vm287, %v1047, %v1085
        %v1087 = vsel %vm289, %v1054, %v1086
        %v1088 = vsel %vm291, %v1061, %v1087
        %v1089 = vsel %vm293, %v1068, %v1088
        %v1090 = vsel %vm295, %v1075, %v1089
        %1092 = vst [vmem:[%s177] sm:$0xff] %v1090
        %1093 = vst [vmem:[%s177 + $0x8] sm:$0xff] %v1090
        %s1094 = sand.u32 %s75, 1
        %s1095 = scalar_lea.sflag [#allocation4], %s1094
        %s1096 = sand.u32 %s75, 1
        %s1097 = smul.addr %s1096, 16
        %s1098 = scalar_lea.vmem [#allocation7], %s1097
        // Predicated region
        $region37: #{tpu_custom_call.1} parent=27 // pred_check
          %p1099 = pneg %p85
        $region38: #{tpu_custom_call.1} parent=27 // pred_check_branch
          %1101 = sbr.rel (%p1099) target = $region40
        $region39: #{tpu_custom_call.1} parent=27 // pred_region
          %s1103 = ssub.s32 256, 256
          %1104 = vsyncadd %s1095, %s1103
          %s1105 = smul.addr %s20, 2
          %s1106 = smul.addr %s1105, 128
          %s1107 = scalar_lea.hbm %s2, %s1106
          %s1109 = sshll.u32 %s1098, 4
          %s1110 = int_to_ptr.vmem [resolvable:$true] %s1109
          %1112 = dma.vmem_to_hbm [thread:$0]  %s1110, 256, %s1107, %s1095
        $region40: #{tpu_custom_call.1} parent=27 // pred_fallthru
          _
      $region28: #{tpu_custom_call.1} parent=5 // pred_fallthru
        _
      %p1113 = scmp.le.s32.totalorder 2, %s15
      // Predicated region
      $region41: #{tpu_custom_call.1} parent=5 // pred_check
        %p1114 = pneg %p1113
      $region42: #{tpu_custom_call.1} parent=5 // pred_check_branch
        %1116 = sbr.rel (%p1114) target = $region44
      $region43: #{tpu_custom_call.1} parent=5 // pred_region
        %s1117 = ssub.s32 %s15, 2
        // Predicated region
        $region45: #{tpu_custom_call.1} parent=43 // pred_check
          %p1118 = pneg %p91
        $region46: #{tpu_custom_call.1} parent=43 // pred_check_branch
          %1120 = sbr.rel (%p1118) target = $region48
        $region47: #{tpu_custom_call.1} parent=43 // pred_region
          %s1121 = sand.u32 %s76, 1
          %s1122 = scalar_lea.sflag [#allocation4], %s1121
          %s1123 = sand.u32 %s76, 1
          %s1124 = smul.addr %s1123, 16
          %s1125 = scalar_lea.vmem [#allocation7], %s1124
          %1126 = dma.done %s1122, 256
        $region48: #{tpu_custom_call.1} parent=43 // pred_fallthru
          _
      $region44: #{tpu_custom_call.1} parent=5 // pred_fallthru
        _
    $region6: #{tpu_custom_call.1} parent=1 // loop_footer
      %s19 = sadd.s32 1, %s15
    $region7: #{tpu_custom_call.1} parent=1 // loop_footer_branch
      %14 = sbr.rel target = $region3
    $region8: #{tpu_custom_call.1} parent=1 // loop_exit
      _
    %1127 = vsyncpa [#allocation3], 1
    %s1128 = scalar_lea.sflag [#allocation3], 1
    %1129 = vsyncpa %s1128, 1
    %1130 = vsyncpa [#allocation6], 1
    %1131 = vsyncpa [#allocation4], 1
    %s1132 = scalar_lea.sflag [#allocation4], 1
    %1133 = vsyncpa %s1132, 1

</llo_original>
